<compile_context>
chip_gen: v6e
topology: v6e:2x2x1
jax: 0.10.0
libtpu: 0.0.40
codegen_flags: <defaults>
</compile_context>

<pallas_src>
import functools
import math

import jax
import jax.numpy as jnp
from jax import lax
from jax.experimental import pallas as pl
from jax.experimental.pallas import tpu as pltpu


def _residual_block_kernel(x_ref, w_ref, o_ref, *, width):
    """One grid step: bt channel-groups of flattened images.

    x_ref : (bt, Cg, HW)     f32  pre-activation input (also the residual)
    w_ref : (CgOut, 9*Cg)    bf16 packed conv weights, col = tap*Cg + group_ch
    o_ref : (bt, CgOut, HW)  output (lane axis = HW -> lane-dense stores)
    """
    bt, cg, hw = x_ref.shape
    rows = bt * cg

    x = x_ref[...].astype(jnp.float32)                      # (bt, cg, hw)
    # LeakyReLU(0.2) in f32 on the VPU. LeakyReLU(0) == 0, so masked halo taps
    # stay zero.
    act3 = jnp.where(x > 0, x, jnp.float32(0.2) * x)
    # Free relayout: cg is a multiple of 8, so merging (bt, cg) keeps tiling.
    act = act3.reshape(rows, hw)

    # Edge masks depend only on the lane position -> compute once at (1, hw).
    lane = lax.broadcasted_iota(jnp.int32, (1, hw), 1)
    if width & (width - 1) == 0:
        wcol = lane & (width - 1)
    else:
        wcol = lane % width   # TODO(synk): non-pow2 width remainder lowering
    first_row = lane < width              # h == 0
    last_row = lane >= hw - width         # h == H-1
    first_col = wcol == 0                 # w == 0
    last_col = wcol == width - 1          # w == W-1

    zero = jnp.float32(0.0)
    # Vertical (kh) shifts: lane rolls by +/- one image row (XLU slot).
    up = jnp.where(first_row, zero, pltpu.roll(act, width, axis=1))        # [h-1, w]
    down = jnp.where(last_row, zero, pltpu.roll(act, hw - width, axis=1))  # [h+1, w]

    taps = []
    for sh in (up, act, down):                                             # kh = 0,1,2
        left = jnp.where(first_col, zero, pltpu.roll(sh, 1, axis=1))       # [.., w-1]
        right = jnp.where(last_col, zero, pltpu.roll(sh, hw - 1, axis=1))  # [.., w+1]
        taps += [left, sh, right]                                          # kw = 0,1,2

    # (bt, 9*cg, hw) im2col slab: tap-major, channel minor -> matches w_ref
    # columns. f32 concat is (8,128)-tile aligned, then one cast to bf16.
    slab = jnp.concatenate([t.reshape(bt, cg, hw) for t in taps], axis=1)
    slab = slab.astype(jnp.bfloat16)

    # ONE fused batched MXU matmul per grid step, f32 accumulation.
    w2d = w_ref[...]                                        # (cgo, 9*cg) bf16
    wb = jnp.broadcast_to(w2d, (bt,) + w2d.shape)           # tiny, hoisted
    conv = jnp.einsum("bok,bkl->bol", wb, slab,
                      preferred_element_type=jnp.float32)   # (bt, cgo, hw) f32

    # Residual with the pre-activation input (requires Cin == Cout).
    o_ref[...] = (x + conv).astype(o_ref.dtype)


def _packing(n, c):
    """Return (P images packed per channel-group, channel zero-pad)."""
    if c % 8 == 0:
        return 1, 0
    p = 8 // math.gcd(c, 8)
    if n % p == 0:
        return p, 0                      # free contiguous reshape, no pad pass
    return 1, (-c) % 8                   # fallback: zero-pad channels to 8k


@jax.jit
def residual_block(x_nchw, w_oihw):
    """x_nchw: (N, Cin, H, W) float32.  w_oihw: (Cout, Cin, 3, 3) float32."""
    N, C, H, W = x_nchw.shape
    Cout, Cin, KH, KW = w_oihw.shape
    assert (C, KH, KW) == (Cin, 3, 3), "expected a 3x3 conv matching input channels"
    assert Cin == Cout, "residual x + conv(x) requires in_planes == out_planes"
    HW = H * W

    P, cpad = _packing(N, C)
    C_eff, Cout_eff = C + cpad, Cout + cpad
    G = N // P
    Cg, CgOut = P * C_eff, P * Cout_eff          # multiples of 8

    # Free contiguous reshapes; jnp.pad only in the fallback branch.
    x_flat = x_nchw.reshape(N, C, HW)
    if cpad:
        x_flat = jnp.pad(x_flat, ((0, 0), (0, cpad), (0, 0)))
    x_g = x_flat.reshape(G, Cg, HW)

    # Hoist all weight layout work: (Cout,Cin,3,3) -> block-diagonal-per-tap
    # (CgOut, 9*Cg) with row = p*Cout_eff + o, col = tap*Cg + p*C_eff + ci.
    w_t = jnp.transpose(w_oihw, (2, 3, 0, 1)).reshape(9, Cout, Cin)   # (tap, o, ci)
    if cpad:
        w_t = jnp.pad(w_t, ((0, 0), (0, cpad), (0, cpad)))
    eye = jnp.eye(P, dtype=w_oihw.dtype)
    w2d = jnp.einsum("pq,toc->potqc", eye, w_t).reshape(CgOut, 9 * Cg)
    w2d = w2d.astype(jnp.bfloat16)               # bf16 MXU operand

    # Groups per grid step: amortize ~0.35us/step against the real working set
    # (~96 B per input element: double-buffered f32 in/out blocks, f32 taps,
    # bf16 slab, f32 conv) with a ~12 MiB budget; keep >=2 grid steps so v7x's
    # two TensorCores both get work when possible.
    bytes_per_group = Cg * HW * 96
    bt = max(1, min(G, (12 << 20) // max(1, bytes_per_group)))
    if G > 1:
        bt = min(bt, pl.cdiv(G, 2))
    grid = (pl.cdiv(G, bt),)                     # non-divisible tail is fine:
                                                 # OOB rows are computed & dropped

    kernel = functools.partial(_residual_block_kernel, width=W)
    out_g = pl.pallas_call(
        kernel,
        out_shape=jax.ShapeDtypeStruct((G, CgOut, HW), x_nchw.dtype),
        grid=grid,
        in_specs=[
            pl.BlockSpec((bt, Cg, HW), lambda n: (n, 0, 0)),
            pl.BlockSpec((CgOut, 9 * Cg), lambda n: (0, 0)),
        ],
        out_specs=pl.BlockSpec((bt, CgOut, HW), lambda n: (n, 0, 0)),
        compiler_params=pltpu.CompilerParams(
            dimension_semantics=("parallel",),
            vmem_limit_bytes=32 * 1024 * 1024,
        ),
    )(x_g, w2d)

    out = out_g.reshape(N, Cout_eff, HW)         # free un-packing reshape
    if cpad:
        out = out[:, :Cout, :]
    return out.reshape(N, Cout, H, W)


def _reference(x_nchw, w_oihw):
    """Plain-JAX reference of the PyTorch forward (verification only)."""
    a = jnp.where(x_nchw > 0, x_nchw, 0.2 * x_nchw)
    conv = lax.conv_general_dilated(
        a, w_oihw,
        window_strides=(1, 1),
        padding=((1, 1), (1, 1)),
        dimension_numbers=("NCHW", "OIHW", "NCHW"),
    )
    return x_nchw + conv


if __name__ == "__main__":
    # Small shapes consistent with the module: N=2, C=4 (in==out), 16x16 spatial.
    N, C, H, W = 2, 4, 16, 16
    key = jax.random.PRNGKey(0)
    kx, kw = jax.random.split(key)
    x = jax.random.normal(kx, (N, C, H, W), dtype=jnp.float32)
    # conv3x3(in_planes=4, out_planes=4) weights, OIHW, deterministic init.
    w = 0.1 * jax.random.normal(kw, (C, C, 3, 3), dtype=jnp.float32)

    out = jax.block_until_ready(residual_block(x, w))
    ref = _reference(x, w)

    assert out.shape == (N, C, H, W)
    # Tolerance relaxed for bf16 MXU operands (f32 accumulation, K=36).
    assert jnp.allclose(out, ref, atol=3e-2, rtol=3e-2), "mismatch vs reference"
    print("KERNEL_OK")
</pallas_src>

<mosaic_0001>
module attributes {stable_mosaic.version = 11 : i64} {
  func.func @_residual_block_kernel(%arg0: i32, %arg1: memref<1x8x256xf32, #tpu.memory_space<vmem>>, %arg2: memref<8x72xbf16, #tpu.memory_space<vmem>>, %arg3: memref<1x8x256xf32, #tpu.memory_space<vmem>>) attributes {dimension_semantics = [#tpu.dimension_semantics<parallel>], iteration_bounds = array<i64: 1>, scalar_prefetch = 0 : i64, scratch_operands = 0 : i64, tpu.core_type = #tpu.core_type<tc>, window_params = [{transform_indices = @transform_0, window_bounds = array<i64: 1, 8, 256>}, {pipeline_mode = #tpu.pipeline_mode<synchronous>, transform_indices = @transform_1, window_bounds = array<i64: 8, 72>}, {transform_indices = @transform_2, window_bounds = array<i64: 1, 8, 256>}]} {
    %c0 = arith.constant 0 : index
    %c0_0 = arith.constant 0 : index
    %c0_1 = arith.constant 0 : index
    %0 = vector.load %arg1[%c0, %c0_0, %c0_1] : memref<1x8x256xf32, #tpu.memory_space<vmem>>, vector<1x8x256xf32>
    %cst = arith.constant 0.000000e+00 : f32
    %1 = vector.broadcast %cst : f32 to vector<1x8x256xf32>
    %2 = arith.cmpf ogt, %0, %1 : vector<1x8x256xf32>
    %cst_2 = arith.constant 2.000000e-01 : f32
    %3 = vector.broadcast %cst_2 : f32 to vector<1x8x256xf32>
    %4 = arith.mulf %3, %0 : vector<1x8x256xf32>
    %5 = arith.select %2, %0, %4 : vector<1x8x256xi1>, vector<1x8x256xf32>
    %6 = vector.shape_cast %5 : vector<1x8x256xf32> to vector<8x256xf32>
    %7 = tpu.iota {dimensions = array<i32: 1>} : vector<1x256xi32>
    %c15_i32 = arith.constant 15 : i32
    %8 = vector.broadcast %c15_i32 : i32 to vector<1x256xi32>
    %9 = arith.andi %7, %8 : vector<1x256xi32>
    %c16_i32 = arith.constant 16 : i32
    %10 = vector.broadcast %c16_i32 : i32 to vector<1x256xi32>
    %11 = arith.cmpi slt, %7, %10 : vector<1x256xi32>
    %c240_i32 = arith.constant 240 : i32
    %12 = vector.broadcast %c240_i32 : i32 to vector<1x256xi32>
    %13 = arith.cmpi sge, %7, %12 : vector<1x256xi32>
    %c0_i32 = arith.constant 0 : i32
    %14 = vector.broadcast %c0_i32 : i32 to vector<1x256xi32>
    %15 = arith.cmpi eq, %9, %14 : vector<1x256xi32>
    %c15_i32_3 = arith.constant 15 : i32
    %16 = vector.broadcast %c15_i32_3 : i32 to vector<1x256xi32>
    %17 = arith.cmpi eq, %9, %16 : vector<1x256xi32>
    %c16_i32_4 = arith.constant 16 : i32
    %18 = tpu.dynamic_rotate %6 by %c16_i32_4 dim 1 : vector<8x256xf32>, i32 -> vector<8x256xf32>
    %cst_5 = arith.constant 0.000000e+00 : f32
    %19 = vector.shape_cast %11 : vector<1x256xi1> to vector<1x256xi1>
    %20 = vector.broadcast %19 : vector<1x256xi1> to vector<8x256xi1>
    %21 = vector.broadcast %cst_5 : f32 to vector<8x256xf32>
    %22 = arith.select %20, %21, %18 : vector<8x256xi1>, vector<8x256xf32>
    %c240_i32_6 = arith.constant 240 : i32
    %23 = tpu.dynamic_rotate %6 by %c240_i32_6 dim 1 : vector<8x256xf32>, i32 -> vector<8x256xf32>
    %cst_7 = arith.constant 0.000000e+00 : f32
    %24 = vector.shape_cast %13 : vector<1x256xi1> to vector<1x256xi1>
    %25 = vector.broadcast %24 : vector<1x256xi1> to vector<8x256xi1>
    %26 = vector.broadcast %cst_7 : f32 to vector<8x256xf32>
    %27 = arith.select %25, %26, %23 : vector<8x256xi1>, vector<8x256xf32>
    %c1_i32 = arith.constant 1 : i32
    %28 = tpu.dynamic_rotate %22 by %c1_i32 dim 1 : vector<8x256xf32>, i32 -> vector<8x256xf32>
    %cst_8 = arith.constant 0.000000e+00 : f32
    %29 = vector.shape_cast %15 : vector<1x256xi1> to vector<1x256xi1>
    %30 = vector.broadcast %29 : vector<1x256xi1> to vector<8x256xi1>
    %31 = vector.broadcast %cst_8 : f32 to vector<8x256xf32>
    %32 = arith.select %30, %31, %28 : vector<8x256xi1>, vector<8x256xf32>
    %c255_i32 = arith.constant 255 : i32
    %33 = tpu.dynamic_rotate %22 by %c255_i32 dim 1 : vector<8x256xf32>, i32 -> vector<8x256xf32>
    %cst_9 = arith.constant 0.000000e+00 : f32
    %34 = vector.shape_cast %17 : vector<1x256xi1> to vector<1x256xi1>
    %35 = vector.broadcast %34 : vector<1x256xi1> to vector<8x256xi1>
    %36 = vector.broadcast %cst_9 : f32 to vector<8x256xf32>
    %37 = arith.select %35, %36, %33 : vector<8x256xi1>, vector<8x256xf32>
    %c1_i32_10 = arith.constant 1 : i32
    %38 = tpu.dynamic_rotate %6 by %c1_i32_10 dim 1 : vector<8x256xf32>, i32 -> vector<8x256xf32>
    %cst_11 = arith.constant 0.000000e+00 : f32
    %39 = vector.shape_cast %15 : vector<1x256xi1> to vector<1x256xi1>
    %40 = vector.broadcast %39 : vector<1x256xi1> to vector<8x256xi1>
    %41 = vector.broadcast %cst_11 : f32 to vector<8x256xf32>
    %42 = arith.select %40, %41, %38 : vector<8x256xi1>, vector<8x256xf32>
    %c255_i32_12 = arith.constant 255 : i32
    %43 = tpu.dynamic_rotate %6 by %c255_i32_12 dim 1 : vector<8x256xf32>, i32 -> vector<8x256xf32>
    %cst_13 = arith.constant 0.000000e+00 : f32
    %44 = vector.shape_cast %17 : vector<1x256xi1> to vector<1x256xi1>
    %45 = vector.broadcast %44 : vector<1x256xi1> to vector<8x256xi1>
    %46 = vector.broadcast %cst_13 : f32 to vector<8x256xf32>
    %47 = arith.select %45, %46, %43 : vector<8x256xi1>, vector<8x256xf32>
    %c1_i32_14 = arith.constant 1 : i32
    %48 = tpu.dynamic_rotate %27 by %c1_i32_14 dim 1 : vector<8x256xf32>, i32 -> vector<8x256xf32>
    %cst_15 = arith.constant 0.000000e+00 : f32
    %49 = vector.shape_cast %15 : vector<1x256xi1> to vector<1x256xi1>
    %50 = vector.broadcast %49 : vector<1x256xi1> to vector<8x256xi1>
    %51 = vector.broadcast %cst_15 : f32 to vector<8x256xf32>
    %52 = arith.select %50, %51, %48 : vector<8x256xi1>, vector<8x256xf32>
    %c255_i32_16 = arith.constant 255 : i32
    %53 = tpu.dynamic_rotate %27 by %c255_i32_16 dim 1 : vector<8x256xf32>, i32 -> vector<8x256xf32>
    %cst_17 = arith.constant 0.000000e+00 : f32
    %54 = vector.shape_cast %17 : vector<1x256xi1> to vector<1x256xi1>
    %55 = vector.broadcast %54 : vector<1x256xi1> to vector<8x256xi1>
    %56 = vector.broadcast %cst_17 : f32 to vector<8x256xf32>
    %57 = arith.select %55, %56, %53 : vector<8x256xi1>, vector<8x256xf32>
    %58 = vector.shape_cast %32 : vector<8x256xf32> to vector<1x8x256xf32>
    %59 = vector.shape_cast %22 : vector<8x256xf32> to vector<1x8x256xf32>
    %60 = vector.shape_cast %37 : vector<8x256xf32> to vector<1x8x256xf32>
    %61 = vector.shape_cast %42 : vector<8x256xf32> to vector<1x8x256xf32>
    %62 = vector.shape_cast %6 : vector<8x256xf32> to vector<1x8x256xf32>
    %63 = vector.shape_cast %47 : vector<8x256xf32> to vector<1x8x256xf32>
    %64 = vector.shape_cast %52 : vector<8x256xf32> to vector<1x8x256xf32>
    %65 = vector.shape_cast %27 : vector<8x256xf32> to vector<1x8x256xf32>
    %66 = vector.shape_cast %57 : vector<8x256xf32> to vector<1x8x256xf32>
    %67 = tpu.concatenate %58, %59, %60, %61, %62, %63, %64, %65, %66 in 1 : vector<1x8x256xf32>, vector<1x8x256xf32>, vector<1x8x256xf32>, vector<1x8x256xf32>, vector<1x8x256xf32>, vector<1x8x256xf32>, vector<1x8x256xf32>, vector<1x8x256xf32>, vector<1x8x256xf32> -> vector<1x72x256xf32>
    %68 = arith.truncf %67 : vector<1x72x256xf32> to vector<1x72x256xbf16>
    %c0_18 = arith.constant 0 : index
    %c0_19 = arith.constant 0 : index
    %69 = vector.load %arg2[%c0_18, %c0_19] : memref<8x72xbf16, #tpu.memory_space<vmem>>, vector<8x72xbf16>
    %70 = vector.shape_cast %69 : vector<8x72xbf16> to vector<1x8x72xbf16>
    "tpu.trace_start"() <{level = 10 : i32, message = "bok,bkl->bol"}> : () -> ()
    %cst_20 = arith.constant dense<0.000000e+00> : vector<1x8x256xf32>
    %71 = tpu.matmul %70, %68, %cst_20 {dimension_numbers = #tpu.dot_dimension_numbers<[2], [1], [1], [2], [0, 0, 0, 1, 1, 2], [0], [0]>} : vector<1x8x72xbf16>, vector<1x72x256xbf16>, vector<1x8x256xf32> -> vector<1x8x256xf32>
    "tpu.trace_stop"() : () -> ()
    %72 = arith.addf %0, %71 : vector<1x8x256xf32>
    %c0_21 = arith.constant 0 : index
    %c0_22 = arith.constant 0 : index
    %c0_23 = arith.constant 0 : index
    %73 = vector.load %arg3[%c0_21, %c0_22, %c0_23] : memref<1x8x256xf32, #tpu.memory_space<vmem>>, vector<1x8x256xf32>
    tpu.vector_store %arg3[%c0_21, %c0_22, %c0_23], %72 {strides = array<i32>} : memref<1x8x256xf32, #tpu.memory_space<vmem>>, vector<1x8x256xf32>,
    return
  }
  func.func @transform_0(%arg0: i32) -> (i32, i32, i32) {
    %c0_i32 = arith.constant 0 : i32
    %c0_i32_0 = arith.constant 0 : i32
    %c0_i32_1 = arith.constant 0 : i32
    return %arg0, %c0_i32, %c0_i32_0 : i32, i32, i32
  }
  func.func @transform_1(%arg0: i32) -> (i32, i32) {
    %c0_i32 = arith.constant 0 : i32
    %c0_i32_0 = arith.constant 0 : i32
    %c0_i32_1 = arith.constant 0 : i32
    return %c0_i32, %c0_i32_0 : i32, i32
  }
  func.func @transform_2(%arg0: i32) -> (i32, i32, i32) {
    %c0_i32 = arith.constant 0 : i32
    %c0_i32_0 = arith.constant 0 : i32
    %c0_i32_1 = arith.constant 0 : i32
    return %arg0, %c0_i32, %c0_i32_0 : i32, i32, i32
  }
}

</mosaic_0001>

<llo_original>
// kernel: residual_block.1
$region0: #{residual_block.1}
  #allocation0 [shape = 'u32[]', space=smem, size = 0x4, offset = 0x4, fixed_abs, tag = 'smem constant byte address 0x4 - core index']
  #allocation1 [shape = 'u32[144,128]{1,0:T(1,128)}', space=vmem, size = 0x12000, scoped, tag = 'internal scratch']
  %s0 = inlined_call_operand.vmem [shape: f32[1,8,256], index: 0, kind: input, shape index: {}]
  %s1 = inlined_call_operand.vmem [shape: bf16[8,72], index: 1, kind: input, shape index: {}]
  %s2 = inlined_call_operand.vmem [shape: f32[1,8,256], index: 2, kind: output, shape index: {}]
  %s3 = sld [smem:[#allocation0]]
  $region18: #{residual_block.1} parent=0
    _
  %s5 = ssub.s32 1, %s3
  %s6 = scalar_select 0, %s5, %s3
  // Predicated region
  $region2: #{residual_block.1} parent=0 // pred_check
    _
  $region3: #{residual_block.1} parent=0 // pred_check_branch
    %8 = sbr.rel (0) target = $region5
  $region4: #{residual_block.1} parent=0 // pred_region
    _
  $region5: #{residual_block.1} parent=0 // pred_fallthru
    _
  // Predicated region
  $region6: #{residual_block.1} parent=0 // pred_check
    _
  $region7: #{residual_block.1} parent=0 // pred_check_branch
    %10 = sbr.rel (0) target = $region9
  $region8: #{residual_block.1} parent=0 // pred_region
    _
  $region9: #{residual_block.1} parent=0 // pred_fallthru
    _
  %v12 = vld [vmem:[%s0] sm:$0xff]
  %v13 = vld [vmem:[%s0 + $0x8] sm:$0xff]
  %vm14 = vcmp.gt.f32.partialorder %v12, 0.0
  %vm15 = vcmp.gt.f32.partialorder %v13, 0.0
  %v16 = vmul.f32 %v12, 0.2
  %v17 = vmul.f32 %v13, 0.2
  %v18 = vsel %vm14, %v12, %v16
  %v19 = vsel %vm15, %v13, %v17
  %v20 = vlaneseq
  %v21 = vand.u32 %v20, 127
  %v22 = vadd.s32 %v21, 128
  %v23 = vand.u32 %v21, 15
  %v24 = vand.u32 %v22, 15
  %vm25 = vcmp.lt.s32.totalorder %v21, 16
  %vm26 = vcmp.lt.s32.totalorder %v22, 16
  %vm27 = vcmp.ge.s32.totalorder %v21, 240
  %vm28 = vcmp.ge.s32.totalorder %v22, 240
  %vm29 = vcmp.eq.s32.totalorder %v23, 0
  %vm30 = vcmp.eq.s32.totalorder %v24, 0
  %vm31 = vcmp.eq.s32.totalorder %v23, 15
  %vm32 = vcmp.eq.s32.totalorder %v24, 15
  %33 = vrot.lane.b32.xlu0 %v18, 16
  %v34 = vpop.permute.xlu0 %33
  %35 = vrot.lane.b32.xlu0 %v19, 16
  %v36 = vpop.permute.xlu0 %35
  %v37 = vsel %vm25, %v34, %v36
  %v38 = vsel %vm25, %v36, %v34
  %v39 = vsel %vm25, 1, 0
  %v40 = vsel %vm26, 1, 0
  %vm41 = vcmp.eq.s32.totalorder %v39, 1
  %vm42 = vcmp.eq.s32.totalorder %v40, 1
  %v43 = vsel %vm41, 0.0, %v38
  %v44 = vsel %vm42, 0.0, %v37
  %45 = vrot.lane.b32.xlu0 %v18, 112
  %v46 = vpop.permute.xlu0 %45
  %47 = vrot.lane.b32.xlu0 %v19, 112
  %v48 = vpop.permute.xlu0 %47
  %vm49 = vcmp.lt.s32.totalorder %v21, 112
  %v50 = vsel %vm49, %v46, %v48
  %v51 = vsel %vm49, %v48, %v46
  %v52 = vsel %vm27, 1, 0
  %v53 = vsel %vm28, 1, 0
  %vm54 = vcmp.eq.s32.totalorder %v52, 1
  %vm55 = vcmp.eq.s32.totalorder %v53, 1
  %v56 = vsel %vm54, 0.0, %v50
  %v57 = vsel %vm55, 0.0, %v51
  %58 = vrot.lane.b32.xlu0 %v43, 1
  %v59 = vpop.permute.xlu0 %58
  %60 = vrot.lane.b32.xlu0 %v44, 1
  %v61 = vpop.permute.xlu0 %60
  %vm62 = vcmp.lt.s32.totalorder %v21, 1
  %v63 = vsel %vm62, %v59, %v61
  %v64 = vsel %vm62, %v61, %v59
  %v65 = vsel %vm29, 1, 0
  %v66 = vsel %vm30, 1, 0
  %vm67 = vcmp.eq.s32.totalorder %v65, 1
  %vm68 = vcmp.eq.s32.totalorder %v66, 1
  %v69 = vsel %vm67, 0.0, %v64
  %v70 = vsel %vm68, 0.0, %v63
  %71 = vrot.lane.b32.xlu0 %v43, 127
  %v72 = vpop.permute.xlu0 %71
  %73 = vrot.lane.b32.xlu0 %v44, 127
  %v74 = vpop.permute.xlu0 %73
  %vm75 = vcmp.lt.s32.totalorder %v21, 127
  %v76 = vsel %vm75, %v72, %v74
  %v77 = vsel %vm75, %v74, %v72
  %v78 = vsel %vm31, 1, 0
  %v79 = vsel %vm32, 1, 0
  %vm80 = vcmp.eq.s32.totalorder %v78, 1
  %vm81 = vcmp.eq.s32.totalorder %v79, 1
  %v82 = vsel %vm80, 0.0, %v76
  %v83 = vsel %vm81, 0.0, %v77
  %84 = vrot.lane.b32.xlu0 %v18, 1
  %v85 = vpop.permute.xlu0 %84
  %86 = vrot.lane.b32.xlu0 %v19, 1
  %v87 = vpop.permute.xlu0 %86
  %v88 = vsel %vm62, %v85, %v87
  %v89 = vsel %vm62, %v87, %v85
  %v90 = vsel %vm67, 0.0, %v89
  %v91 = vsel %vm68, 0.0, %v88
  %92 = vrot.lane.b32.xlu0 %v18, 127
  %v93 = vpop.permute.xlu0 %92
  %94 = vrot.lane.b32.xlu0 %v19, 127
  %v95 = vpop.permute.xlu0 %94
  %v96 = vsel %vm75, %v93, %v95
  %v97 = vsel %vm75, %v95, %v93
  %v98 = vsel %vm80, 0.0, %v96
  %v99 = vsel %vm81, 0.0, %v97
  %100 = vrot.lane.b32.xlu0 %v56, 1
  %v101 = vpop.permute.xlu0 %100
  %102 = vrot.lane.b32.xlu0 %v57, 1
  %v103 = vpop.permute.xlu0 %102
  %v104 = vsel %vm62, %v101, %v103
  %v105 = vsel %vm62, %v103, %v101
  %v106 = vsel %vm67, 0.0, %v105
  %v107 = vsel %vm68, 0.0, %v104
  %108 = vrot.lane.b32.xlu0 %v56, 127
  %v109 = vpop.permute.xlu0 %108
  %110 = vrot.lane.b32.xlu0 %v57, 127
  %v111 = vpop.permute.xlu0 %110
  %v112 = vsel %vm75, %v109, %v111
  %v113 = vsel %vm75, %v111, %v109
  %v114 = vsel %vm80, 0.0, %v112
  %v115 = vsel %vm81, 0.0, %v113
  %v116 = vpack.c.bf16 %v43, %v69
  %v117 = vpack.c.bf16 %v44, %v70
  %v118 = vpack.c.bf16 %v90, %v82
  %v119 = vpack.c.bf16 %v91, %v83
  %v120 = vpack.c.bf16 %v98, %v18
  %v121 = vpack.c.bf16 %v99, %v19
  %v122 = vpack.c.bf16 %v56, %v106
  %v123 = vpack.c.bf16 %v57, %v107
  %v124 = vpack.c.bf16 %v114, %v114
  %v125 = vpack.c.bf16 %v115, %v115
  %v126 = vld [vmem:[%s1] sm:$0xf]
  %vm127 = vcmask 588800
  %v129 = vsel %vm127, %v126, 0
  %vm131 = vcmask 1043456
  %v133 = vsel %vm131, %v124, 0
  %v136 = vsel %vm131, %v125, 0
  %138 = vmatprep.subr.bf16.mxu0 0
  %139 = vmatpush1.bf16.msra.mxu0 0
  %140 = vmatprep.subr.bf16.mxu0 0
  %141 = vmatpush1.bf16.msra.mxu0 0
  %142 = vmatprep.subr.bf16.mxu0 0
  %143 = vmatpush1.bf16.msra.mxu0 0
  %144 = vmatprep.subr.bf16.mxu0 %v136
  %145 = vmatpush1.bf16.msra.mxu0 %v133
  %146 = vmatprep.subr.bf16.mxu0 %v123
  %147 = vmatpush1.bf16.msra.mxu0 %v122
  %148 = vmatprep.subr.bf16.mxu0 %v121
  %149 = vmatpush1.bf16.msra.mxu0 %v120
  %150 = vmatprep.subr.bf16.mxu0 %v119
  %151 = vmatpush1.bf16.msra.mxu0 %v118
  %152 = vmatprep.subr.bf16.mxu0 %v117
  %153 = vmatpush1.bf16.msra.mxu0 %v116
  %154 = vmatprep.subr.bf16.mxu0 0
  %155 = vmatpush2.bf16.msra.mxu0 0
  %156 = vmatprep.subr.bf16.mxu0 0
  %157 = vmatpush2.bf16.msra.mxu0 0
  %158 = vmatprep.subr.bf16.mxu0 0
  %159 = vmatpush2.bf16.msra.mxu0 0
  %160 = vmatprep.subr.bf16.mxu0 0
  %161 = vmatpush2.bf16.msra.mxu0 0
  %162 = vmatprep.subr.bf16.mxu0 0
  %163 = vmatpush2.bf16.msra.mxu0 0
  %164 = vmatprep.subr.bf16.mxu0 0
  %165 = vmatpush2.bf16.msra.mxu0 0
  %166 = vmatprep.subr.bf16.mxu0 0
  %167 = vmatpush2.bf16.msra.mxu0 0
  %168 = vmatprep.subr.bf16.mxu0 0
  %169 = vmatpush2.bf16.msra.mxu0 0
  %170 = vmatprep.mubr.bf16.mxu0 0
  %171 = vmatmul.mubr.bf16.gmra.mxu0 %v129
  %v172 = vpop.f32.mrf.mxu0
  %v173 = vadd.f32 0.0, %v172
  %v174 = vpop.f32.mrf.mxu0
  %v175 = vadd.f32 0.0, %v174
  %v176 = vpop.f32.mrf.mxu0
  %v177 = vpop.f32.mrf.mxu0
  %178 = vdwg.mxu0
  %v179 = vadd.f32 %v12, %v173
  %v180 = vadd.f32 %v13, %v175
  %181 = vst [vmem:[%s2] sm:$0xff] %v179
  %182 = vst [vmem:[%s2 + $0x8] sm:$0xff] %v180
  // Predicated region
  $region10: #{residual_block.1} parent=0 // pred_check
    _
  $region11: #{residual_block.1} parent=0 // pred_check_branch
    %184 = sbr.rel (0) target = $region13
  $region12: #{residual_block.1} parent=0 // pred_region
    _
  $region13: #{residual_block.1} parent=0 // pred_fallthru
    _
  // Predicated region
  $region14: #{residual_block.1} parent=0 // pred_check
    _
  $region15: #{residual_block.1} parent=0 // pred_check_branch
    %186 = sbr.rel (0) target = $region17
  $region16: #{residual_block.1} parent=0 // pred_region
    _
  $region17: #{residual_block.1} parent=0 // pred_fallthru
    _

</llo_original>
